<compile_context>
chip_gen: v5e
topology: v5e:2x2
jax: 0.10.0
libtpu: 0.0.40
codegen_flags: <defaults>
</compile_context>

<pallas_src>
import functools

import jax
import jax.numpy as jnp
from jax.experimental import pallas as pl
from jax.experimental.pallas import tpu as pltpu

BN_EPS = 1e-5
_NEG_BIG = -1e30                 # bias on padded output lanes -> exp() == 0
_MATMUL_DTYPE = jnp.bfloat16     # MXU operand dtype (accumulation stays f32)
_OUT_DTYPE = jnp.bfloat16        # HBM writeback dtype (halves output traffic)


def _round_up(n, m):
    return ((n + m - 1) // m) * m


def mlp_kernel(x_ref, w1_ref, b1_ref, w2_ref, b2_ref, o_ref):
    # layer1: Linear (eval-mode BN already folded into w1/b1) -> ReLU.
    # x streams in its native f32; the bf16 cast happens here (hidden under
    # the MXU/DMA pipeline) instead of as a separate XLA pass in the wrapper.
    # TODO(synk): train-mode Dropout / batch-stat BatchNorm not implemented
    # (eval-mode semantics: Dropout is identity, BN uses running stats).
    x = x_ref[...].astype(_MATMUL_DTYPE)
    h = jnp.dot(x, w1_ref[...], preferred_element_type=jnp.float32) + b1_ref[...]
    h = jnp.maximum(h, 0.0)

    # layer2: Linear -> Softmax over the real lanes (padded lanes hold a -1e30
    # bias, so their exp underflows to exactly 0 and the sum is unaffected).
    logits = jnp.dot(h.astype(w2_ref.dtype), w2_ref[...],
                     preferred_element_type=jnp.float32) + b2_ref[...]
    m = jnp.max(logits, axis=1, keepdims=True)
    e = jnp.exp(logits - m)
    denom = jnp.sum(e, axis=1, keepdims=True)
    # Exact divide: EUP is not contended here and this removes the approx-
    # reciprocal error from the row sums. Output stored as bf16.
    o_ref[...] = (e / denom).astype(o_ref.dtype)


def fuse_and_pad_params(raw_params):
    """Fold eval-mode BN into Linear1, pad hidden/output dims to 128 lanes,
    and cast the matmul operands to bf16 (biases stay f32). One-time cost,
    outside the hot path."""
    w1, b1, gamma, beta, mean, var, w2, b2 = raw_params
    hid = w1.shape[1]
    out = w2.shape[1]

    scale = gamma * jax.lax.rsqrt(var + BN_EPS)              # (1, hid)
    w1f = w1 * scale                                         # (in, hid)
    b1f = (b1 - mean) * scale + beta                         # (1, hid)

    hid_p = _round_up(hid, 128)
    out_p = _round_up(out, 128)
    # Zero-padded hidden units: h = relu(0*x + 0) = 0 and their w2 rows are 0,
    # so they contribute nothing. Padded output lanes get a -1e30 bias.
    w1f = jnp.pad(w1f, ((0, 0), (0, hid_p - hid)))
    b1f = jnp.pad(b1f, ((0, 0), (0, hid_p - hid)))
    w2p = jnp.pad(w2, ((0, hid_p - hid), (0, out_p - out)))
    b2p = jnp.pad(b2, ((0, 0), (0, out_p - out)), constant_values=_NEG_BIG)

    return (w1f.astype(_MATMUL_DTYPE), b1f.astype(jnp.float32),
            w2p.astype(_MATMUL_DTYPE), b2p.astype(jnp.float32))


@functools.partial(jax.jit,
                   static_argnames=("out_dim", "tile_b", "trim_output"))
def mlp_forward(x, fused_params, *, out_dim, tile_b=512, trim_output=True):
    w1f, b1f, w2p, b2p = fused_params
    B, in_dim = x.shape
    hid_p = w1f.shape[1]
    out_p = w2p.shape[1]

    # Batch tile: 512 streams at ~85% of the HBM roofline (vs ~63% at 256) and
    # is a multiple of 16 (bf16 sublane packing). Per-tile VMEM is <1 MiB even
    # at tb=1024, well inside v7x's 32 MiB default scoped VMEM. Small batches
    # collapse to a single full-array block.
    tb = min(tile_b, _round_up(B, 16))
    b_pad = _round_up(B, tb)
    xp = x if b_pad == B else jnp.pad(x, ((0, b_pad - B), (0, 0)))

    out = pl.pallas_call(
        mlp_kernel,
        out_shape=jax.ShapeDtypeStruct((b_pad, out_p), _OUT_DTYPE),
        grid_spec=pltpu.PrefetchScalarGridSpec(
            num_scalar_prefetch=0,
            grid=(b_pad // tb,),
            in_specs=[
                pl.BlockSpec((tb, in_dim), lambda i: (i, 0)),     # x tile streams (f32)
                # weights/biases: constant index_map -> stay VMEM resident.
                # (v7x, if slabs grow: add pipeline_mode=pl.Buffered(1) here.)
                pl.BlockSpec((in_dim, hid_p), lambda i: (0, 0)),
                pl.BlockSpec((1, hid_p), lambda i: (0, 0)),
                pl.BlockSpec((hid_p, out_p), lambda i: (0, 0)),
                pl.BlockSpec((1, out_p), lambda i: (0, 0)),
            ],
            out_specs=pl.BlockSpec((tb, out_p), lambda i: (i, 0)),  # lane-dense bf16
        ),
        compiler_params=pltpu.CompilerParams(
            # v7x: use pltpu.CORE_PARALLEL on the batch axis if "parallel"
            # does not shard the grid across both TensorCores.
            dimension_semantics=("parallel",),
        ),
    )(xp, w1f, b1f, w2p, b2p)

    if trim_output:
        # Extra HBM pass over the output; at large B prefer trim_output=False
        # and let the consumer read / slice the lane-padded block lazily.
        return out[:B, :out_dim]
    return out


def mlp_reference(x, raw_params):
    """Pure-JAX f32 reference (eval-mode BN / identity dropout)."""
    w1, b1, gamma, beta, mean, var, w2, b2 = raw_params
    h = x @ w1 + b1
    h = (h - mean) * jax.lax.rsqrt(var + BN_EPS) * gamma + beta
    h = jnp.maximum(h, 0.0)
    logits = h @ w2 + b2
    return jax.nn.softmax(logits, axis=1)


def init_params(key, input_dim, hidden_dim, output_dim):
    k1, k2, k3, k4, k5, k6 = jax.random.split(key, 6)
    # PyTorch Linear default init: U(-1/sqrt(fan_in), 1/sqrt(fan_in)).
    # Weights are stored pre-transposed as [in_features, out_features].
    lim1 = 1.0 / (input_dim ** 0.5)
    lim2 = 1.0 / (hidden_dim ** 0.5)
    w1 = jax.random.uniform(k1, (input_dim, hidden_dim), jnp.float32, -lim1, lim1)
    b1 = jax.random.uniform(k2, (1, hidden_dim), jnp.float32, -lim1, lim1)
    w2 = jax.random.uniform(k3, (hidden_dim, output_dim), jnp.float32, -lim2, lim2)
    b2 = jax.random.uniform(k4, (1, output_dim), jnp.float32, -lim2, lim2)
    # BatchNorm1d: gamma=1, beta=0, running stats perturbed so BN is not identity.
    gamma = jnp.ones((1, hidden_dim), jnp.float32)
    beta = jnp.zeros((1, hidden_dim), jnp.float32)
    mean = 0.1 * jax.random.normal(k5, (1, hidden_dim), jnp.float32)
    var = 1.0 + 0.1 * jax.random.uniform(k6, (1, hidden_dim), jnp.float32)
    return (w1, b1, gamma, beta, mean, var, w2, b2)


if __name__ == "__main__":
    hyp = {"input_dim": 32, "hidden_dim": 64, "output_dim": 8, "drop_out": 0.5}
    batch = 8

    key = jax.random.PRNGKey(0)
    kx, kp = jax.random.split(key)
    x = jax.random.normal(kx, (batch, hyp["input_dim"]), jnp.float32)
    raw_params = init_params(kp, hyp["input_dim"], hyp["hidden_dim"],
                             hyp["output_dim"])
    fused_params = fuse_and_pad_params(raw_params)

    out = jax.block_until_ready(
        mlp_forward(x, fused_params, out_dim=hyp["output_dim"]))

    ref = mlp_reference(x, raw_params)
    assert out.shape == (batch, hyp["output_dim"])
    outf = out.astype(jnp.float32)
    # rows sum to ~1 (exact divide; residual error is the bf16 output cast)
    assert bool(jnp.allclose(jnp.sum(outf, axis=1), 1.0, atol=1e-2))
    # matches f32 reference within bf16-matmul + bf16-output tolerance
    assert bool(jnp.allclose(outf, ref, atol=3e-2))
    print("KERNEL_OK")
</pallas_src>

<mosaic_0001>
module attributes {stable_mosaic.version = 11 : i64} {
  func.func @mlp_kernel(%arg0: i32, %arg1: memref<16x32xf32, #tpu.memory_space<vmem>>, %arg2: memref<32x128xbf16, #tpu.memory_space<vmem>>, %arg3: memref<1x128xf32, #tpu.memory_space<vmem>>, %arg4: memref<128x128xbf16, #tpu.memory_space<vmem>>, %arg5: memref<1x128xf32, #tpu.memory_space<vmem>>, %arg6: memref<16x128xbf16, #tpu.memory_space<vmem>>) attributes {dimension_semantics = [#tpu.dimension_semantics<parallel>], iteration_bounds = array<i64: 1>, scalar_prefetch = 0 : i64, scratch_operands = 0 : i64, tpu.core_type = #tpu.core_type<tc>, window_params = [{transform_indices = @transform_0, window_bounds = array<i64: 16, 32>}, {pipeline_mode = #tpu.pipeline_mode<synchronous>, transform_indices = @transform_1, window_bounds = array<i64: 32, 128>}, {pipeline_mode = #tpu.pipeline_mode<synchronous>, transform_indices = @transform_2, window_bounds = array<i64: 1, 128>}, {pipeline_mode = #tpu.pipeline_mode<synchronous>, transform_indices = @transform_3, window_bounds = array<i64: 128, 128>}, {pipeline_mode = #tpu.pipeline_mode<synchronous>, transform_indices = @transform_4, window_bounds = array<i64: 1, 128>}, {transform_indices = @transform_5, window_bounds = array<i64: 16, 128>}]} {
    %c0 = arith.constant 0 : index
    %c0_0 = arith.constant 0 : index
    %0 = vector.load %arg1[%c0, %c0_0] : memref<16x32xf32, #tpu.memory_space<vmem>>, vector<16x32xf32>
    %1 = arith.truncf %0 : vector<16x32xf32> to vector<16x32xbf16>
    %c0_1 = arith.constant 0 : index
    %c0_2 = arith.constant 0 : index
    %2 = vector.load %arg2[%c0_1, %c0_2] : memref<32x128xbf16, #tpu.memory_space<vmem>>, vector<32x128xbf16>
    %cst = arith.constant dense<0.000000e+00> : vector<16x128xf32>
    %3 = tpu.matmul %1, %2, %cst {dimension_numbers = #tpu.dot_dimension_numbers<[1], [0], [0], [1], [0, 0, 1, 1], [], []>} : vector<16x32xbf16>, vector<32x128xbf16>, vector<16x128xf32> -> vector<16x128xf32>
    %c0_3 = arith.constant 0 : index
    %c0_4 = arith.constant 0 : index
    %4 = vector.load %arg3[%c0_3, %c0_4] : memref<1x128xf32, #tpu.memory_space<vmem>>, vector<1x128xf32>
    %5 = vector.broadcast %4 : vector<1x128xf32> to vector<16x128xf32>
    %6 = arith.addf %3, %5 : vector<16x128xf32>
    %cst_5 = arith.constant 0.000000e+00 : f32
    %7 = vector.broadcast %cst_5 : f32 to vector<16x128xf32>
    %8 = arith.maximumf %6, %7 : vector<16x128xf32>
    %9 = arith.truncf %8 : vector<16x128xf32> to vector<16x128xbf16>
    %c0_6 = arith.constant 0 : index
    %c0_7 = arith.constant 0 : index
    %10 = vector.load %arg4[%c0_6, %c0_7] : memref<128x128xbf16, #tpu.memory_space<vmem>>, vector<128x128xbf16>
    %cst_8 = arith.constant dense<0.000000e+00> : vector<16x128xf32>
    %11 = tpu.matmul %9, %10, %cst_8 {dimension_numbers = #tpu.dot_dimension_numbers<[1], [0], [0], [1], [0, 0, 1, 1], [], []>} : vector<16x128xbf16>, vector<128x128xbf16>, vector<16x128xf32> -> vector<16x128xf32>
    %c0_9 = arith.constant 0 : index
    %c0_10 = arith.constant 0 : index
    %12 = vector.load %arg5[%c0_9, %c0_10] : memref<1x128xf32, #tpu.memory_space<vmem>>, vector<1x128xf32>
    %13 = vector.broadcast %12 : vector<1x128xf32> to vector<16x128xf32>
    %14 = arith.addf %11, %13 : vector<16x128xf32>
    %cst_11 = arith.constant dense<0xFF800000> : vector<16xf32>
    %15 = vector.multi_reduction <maximumf>, %14, %cst_11 [1] : vector<16x128xf32> to vector<16xf32>
    %16 = vector.shape_cast %15 : vector<16xf32> to vector<16x1xf32>
    %17 = vector.broadcast %16 : vector<16x1xf32> to vector<16x128xf32>
    %18 = arith.subf %14, %17 : vector<16x128xf32>
    %19 = math.exp %18 : vector<16x128xf32>
    %cst_12 = arith.constant dense<0.000000e+00> : vector<16xf32>
    %20 = vector.multi_reduction <add>, %19, %cst_12 [1] : vector<16x128xf32> to vector<16xf32>
    %21 = vector.shape_cast %20 : vector<16xf32> to vector<16x1xf32>
    %22 = vector.broadcast %21 : vector<16x1xf32> to vector<16x128xf32>
    %23 = arith.divf %19, %22 : vector<16x128xf32>
    %24 = arith.truncf %23 : vector<16x128xf32> to vector<16x128xbf16>
    %c0_13 = arith.constant 0 : index
    %c0_14 = arith.constant 0 : index
    %25 = vector.load %arg6[%c0_13, %c0_14] : memref<16x128xbf16, #tpu.memory_space<vmem>>, vector<16x128xbf16>
    tpu.vector_store %arg6[%c0_13, %c0_14], %24 {strides = array<i32>} : memref<16x128xbf16, #tpu.memory_space<vmem>>, vector<16x128xbf16>,
    return
  }
  func.func @transform_0(%arg0: i32) -> (i32, i32) {
    %c0_i32 = arith.constant 0 : i32
    %c0_i32_0 = arith.constant 0 : i32
    return %arg0, %c0_i32 : i32, i32
  }
  func.func @transform_1(%arg0: i32) -> (i32, i32) {
    %c0_i32 = arith.constant 0 : i32
    %c0_i32_0 = arith.constant 0 : i32
    %c0_i32_1 = arith.constant 0 : i32
    return %c0_i32, %c0_i32_0 : i32, i32
  }
  func.func @transform_2(%arg0: i32) -> (i32, i32) {
    %c0_i32 = arith.constant 0 : i32
    %c0_i32_0 = arith.constant 0 : i32
    %c0_i32_1 = arith.constant 0 : i32
    return %c0_i32, %c0_i32_0 : i32, i32
  }
  func.func @transform_3(%arg0: i32) -> (i32, i32) {
    %c0_i32 = arith.constant 0 : i32
    %c0_i32_0 = arith.constant 0 : i32
    %c0_i32_1 = arith.constant 0 : i32
    return %c0_i32, %c0_i32_0 : i32, i32
  }
  func.func @transform_4(%arg0: i32) -> (i32, i32) {
    %c0_i32 = arith.constant 0 : i32
    %c0_i32_0 = arith.constant 0 : i32
    %c0_i32_1 = arith.constant 0 : i32
    return %c0_i32, %c0_i32_0 : i32, i32
  }
  func.func @transform_5(%arg0: i32) -> (i32, i32) {
    %c0_i32 = arith.constant 0 : i32
    %c0_i32_0 = arith.constant 0 : i32
    return %arg0, %c0_i32 : i32, i32
  }
}

</mosaic_0001>

<llo_original>
// kernel: mlp_forward.1
$region0: #{mlp_forward.1}
  #allocation0 [shape = 'u32[]', space=smem, size = 0x4, offset = 0x4, fixed_abs, tag = 'smem constant byte address 0x4 - core index']
  #allocation1 [shape = 'u32[72,128]{1,0:T(1,128)}', space=vmem, size = 0x9000, scoped, tag = 'internal scratch']
  %s0 = inlined_call_operand.vmem [shape: f32[16,32], index: 0, kind: input, shape index: {}]
  %s1 = inlined_call_operand.vmem [shape: bf16[32,128], index: 1, kind: input, shape index: {}]
  %s2 = inlined_call_operand.vmem [shape: f32[1,128], index: 2, kind: input, shape index: {}]
  %s3 = inlined_call_operand.hbm [shape: bf16[128,128], index: 3, kind: input, shape index: {}]
  %s4 = inlined_call_operand.vmem [shape: f32[1,128], index: 4, kind: input, shape index: {}]
  %s5 = inlined_call_operand.vmem [shape: bf16[16,128], index: 5, kind: output, shape index: {}]
  %s6 = sld [smem:[#allocation0]]
  $region34: #{mlp_forward.1} parent=0
    _
  %s8 = ssub.s32 1, %s6
  %s9 = scalar_select 0, %s8, %s6
  $region1: #{mlp_forward.1} parent=0
    #allocation2 [shape = 'u8[32768]{0}', space=vmem, size = 0x8000, scoped, tag = 'input window, operand 3, single buffered']
    #allocation3 [shape = 's32[1]{0}', space=sflag, size = 0x4, scoped, tag = 'scoped memory for mlp_forward.1']
    %10 = vsyncpa [#allocation3], 0
    // Predicated region
    $region2: #{mlp_forward.1} parent=1 // pred_check
      _
    $region3: #{mlp_forward.1} parent=1 // pred_check_branch
      %12 = sbr.rel (0) target = $region5
    $region4: #{mlp_forward.1} parent=1 // pred_region
      _
    $region5: #{mlp_forward.1} parent=1 // pred_fallthru
      _
    // Predicated region
    $region6: #{mlp_forward.1} parent=1 // pred_check
      _
    $region7: #{mlp_forward.1} parent=1 // pred_check_branch
      %14 = sbr.rel (0) target = $region9
    $region8: #{mlp_forward.1} parent=1 // pred_region
      _
    $region9: #{mlp_forward.1} parent=1 // pred_fallthru
      _
    // Predicated region
    $region10: #{mlp_forward.1} parent=1 // pred_check
      _
    $region11: #{mlp_forward.1} parent=1 // pred_check_branch
      %16 = sbr.rel (0) target = $region13
    $region12: #{mlp_forward.1} parent=1 // pred_region
      _
    $region13: #{mlp_forward.1} parent=1 // pred_fallthru
      _
    // Predicated region
    $region14: #{mlp_forward.1} parent=1 // pred_check
      _
    $region15: #{mlp_forward.1} parent=1 // pred_check_branch
      %18 = sbr.rel (0) target = $region17
    $region16: #{mlp_forward.1} parent=1 // pred_region
      %20 = vsyncadd [#allocation3], 0
      %s21 = sshll.u32 %s3, 4
      %s22 = int_to_ptr.hbm [resolvable:$true] %s21
      %s23 = sshll.u32 [#allocation2], 4
      %s24 = int_to_ptr.vmem [resolvable:$true] %s23
      %29 = dma.hbm_to_vmem [thread:$0]  %s22, 1024, %s24, [#allocation3], 64, 64, 4
    $region17: #{mlp_forward.1} parent=1 // pred_fallthru
      _
    // Predicated region
    $region18: #{mlp_forward.1} parent=1 // pred_check
      _
    $region19: #{mlp_forward.1} parent=1 // pred_check_branch
      %31 = sbr.rel (0) target = $region21
    $region20: #{mlp_forward.1} parent=1 // pred_region
      _
    $region21: #{mlp_forward.1} parent=1 // pred_fallthru
      _
    // Predicated region
    $region22: #{mlp_forward.1} parent=1 // pred_check
      _
    $region23: #{mlp_forward.1} parent=1 // pred_check_branch
      %33 = sbr.rel (0) target = $region25
    $region24: #{mlp_forward.1} parent=1 // pred_region
      %35 = dma.done [#allocation3], 1024
    $region25: #{mlp_forward.1} parent=1 // pred_fallthru
      _
    %v37 = vld [vmem:[%s0] sm:$0xff]
    %v38 = vld [vmem:[%s0 + $0x8] sm:$0xff]
    %v39 = vpack.c.bf16 %v38, %v37
    %v40 = vld [vmem:[%s1] sm:$0xf]
    %v41 = vld [vmem:[%s1 + $0x4] sm:$0xf]
    %v42 = vld [vmem:[%s1 + $0x8] sm:$0xf]
    %v43 = vld [vmem:[%s1 + $0xc] sm:$0xf]
    %v44 = vld [vmem:[%s2] sm:$0x1]
    %v46 = vperm.slane %v44, 0
    %v52 = vunpack.c.l.b16 %v40
    %v53 = vunpack.c.l.b16 %v41
    %v54 = vunpack.c.l.b16 %v42
    %v55 = vunpack.c.l.b16 %v43
    %v56 = vpack.c.b16 %v53, %v52
    %v57 = vpack.c.b16 %v55, %v54
    %vm60 = vcmask 261120
    %v62 = vsel %vm60, %v39, 0
    %64 = vmatpush.bf16.msra.mxu0 0
    %65 = vmatpush.bf16.msra.mxu0 0
    %66 = vmatpush.bf16.msra.mxu0 0
    %67 = vmatpush.bf16.msra.mxu0 0
    %68 = vmatpush.bf16.msra.mxu0 0
    %69 = vmatpush.bf16.msra.mxu0 0
    %70 = vmatpush.bf16.msra.mxu0 %v57
    %71 = vmatpush.bf16.msra.mxu0 %v56
    %72 = vmatmul.bf16.gmra.mxu0 %v62
    %v73 = vpop.f32.mrf.mxu0
    %v74 = vadd.f32 %v46, %v73
    %v75 = vpop.f32.mrf.mxu0
    %v76 = vadd.f32 %v46, %v75
    %77 = vdwg.mxu0
    %v78 = vmax.f32 %v74, 0.0
    %v79 = vmax.f32 %v76, 0.0
    %v80 = vpack.c.bf16 %v79, %v78
    %v81 = vld [vmem:[#allocation2] sm:$0xf]
    %v82 = vld [vmem:[#allocation2 + $0x4] sm:$0xf]
    %v83 = vld [vmem:[#allocation2 + $0x8] sm:$0xf]
    %v84 = vld [vmem:[#allocation2 + $0xc] sm:$0xf]
    %v85 = vld [vmem:[#allocation2 + $0x10] sm:$0xf]
    %v86 = vld [vmem:[#allocation2 + $0x14] sm:$0xf]
    %v87 = vld [vmem:[#allocation2 + $0x18] sm:$0xf]
    %v88 = vld [vmem:[#allocation2 + $0x1c] sm:$0xf]
    %v89 = vld [vmem:[#allocation2 + $0x20] sm:$0xf]
    %v90 = vld [vmem:[#allocation2 + $0x24] sm:$0xf]
    %v91 = vld [vmem:[#allocation2 + $0x28] sm:$0xf]
    %v92 = vld [vmem:[#allocation2 + $0x2c] sm:$0xf]
    %v93 = vld [vmem:[#allocation2 + $0x30] sm:$0xf]
    %v94 = vld [vmem:[#allocation2 + $0x34] sm:$0xf]
    %v95 = vld [vmem:[#allocation2 + $0x38] sm:$0xf]
    %v96 = vld [vmem:[#allocation2 + $0x3c] sm:$0xf]
    %v97 = vld [vmem:[%s4] sm:$0x1]
    %v99 = vperm.slane %v97, 0
    %v117 = vunpack.c.l.b16 %v81
    %v118 = vunpack.c.l.b16 %v82
    %v119 = vunpack.c.l.b16 %v83
    %v120 = vunpack.c.l.b16 %v84
    %v121 = vunpack.c.l.b16 %v85
    %v122 = vunpack.c.l.b16 %v86
    %v123 = vunpack.c.l.b16 %v87
    %v124 = vunpack.c.l.b16 %v88
    %v125 = vunpack.c.l.b16 %v89
    %v126 = vunpack.c.l.b16 %v90
    %v127 = vunpack.c.l.b16 %v91
    %v128 = vunpack.c.l.b16 %v92
    %v129 = vunpack.c.l.b16 %v93
    %v130 = vunpack.c.l.b16 %v94
    %v131 = vunpack.c.l.b16 %v95
    %v132 = vunpack.c.l.b16 %v96
    %v133 = vpack.c.b16 %v118, %v117
    %v134 = vpack.c.b16 %v120, %v119
    %v135 = vpack.c.b16 %v122, %v121
    %v136 = vpack.c.b16 %v124, %v123
    %v137 = vpack.c.b16 %v126, %v125
    %v138 = vpack.c.b16 %v128, %v127
    %v139 = vpack.c.b16 %v130, %v129
    %v140 = vpack.c.b16 %v132, %v131
    %149 = vmatpush.bf16.msra.mxu0 %v140
    %150 = vmatpush.bf16.msra.mxu0 %v139
    %151 = vmatpush.bf16.msra.mxu0 %v138
    %152 = vmatpush.bf16.msra.mxu0 %v137
    %153 = vmatpush.bf16.msra.mxu0 %v136
    %154 = vmatpush.bf16.msra.mxu0 %v135
    %155 = vmatpush.bf16.msra.mxu0 %v134
    %156 = vmatpush.bf16.msra.mxu0 %v133
    %157 = vmatmul.bf16.gmra.mxu0 %v80
    %v158 = vpop.f32.mrf.mxu0
    %v159 = vadd.f32 %v99, %v158
    %v160 = vpop.f32.mrf.mxu0
    %v161 = vadd.f32 %v99, %v160
    %162 = vdwg.mxu0
    %163 = vmax.xlane.f32.xlu0 %v159
    %v164 = vpop.xlane.xlu0 %163
    %165 = vmax.xlane.f32.xlu0 %v161
    %v166 = vpop.xlane.xlu0 %165
    %v167 = vsub.f32 %v159, %v164
    %v168 = vsub.f32 %v161, %v166
    %v169 = vmul.f32 %v167, 1.442695
    %v170 = vpow.pop %v169
    %v171 = vmul.f32 %v168, 1.442695
    %v172 = vpow.pop %v171
    %173 = vadd.xlane.f32.xlu0 %v170
    %v174 = vpop.xlane.xlu0 %173
    %175 = vadd.xlane.f32.xlu0 %v172
    %v176 = vpop.xlane.xlu0 %175
    %v177 = vrcp.pop %v174
    %v178 = vmul.f32 %v174, %v177
    %v179 = vsub.f32 1.0, %v178
    %v180 = vmul.f32 %v177, %v179
    %v181 = vadd.f32 %v177, %v180
    %vm182 = vweird.f32 %v174
    %vm183 = vweird.f32 %v177
    %vm184 = vmor %vm182, %vm183
    %v185 = vsel %vm184, %v177, %v181
    %v186 = vand.u32 2147483647, %v174
    %vm187 = vcmp.eq.f32.partialorder %v186, 8.507059e+37
    %v188 = vand.u32 %v174, 2147483648
    %v189 = vor.u32 1.1754944e-38, %v188
    %v190 = vsel %vm187, %v189, %v185
    %v191 = vmul.f32 %v170, %v190
    %v192 = vrcp.pop %v176
    %v193 = vmul.f32 %v176, %v192
    %v194 = vsub.f32 1.0, %v193
    %v195 = vmul.f32 %v192, %v194
    %v196 = vadd.f32 %v192, %v195
    %vm197 = vweird.f32 %v176
    %vm198 = vweird.f32 %v192
    %vm199 = vmor %vm197, %vm198
    %v200 = vsel %vm199, %v192, %v196
    %v201 = vand.u32 2147483647, %v176
    %vm202 = vcmp.eq.f32.partialorder %v201, 8.507059e+37
    %v203 = vand.u32 %v176, 2147483648
    %v204 = vor.u32 1.1754944e-38, %v203
    %v205 = vsel %vm202, %v204, %v200
    %v206 = vmul.f32 %v172, %v205
    %v207 = vpack.c.bf16 %v191, %v191
    %v208 = vpack.c.bf16 %v206, %v206
    %209 = vst [vmem:[%s5] sm:$0xf] %v207
    %210 = vst [vmem:[%s5 + $0x4] sm:$0xf] %v208
    // Predicated region
    $region26: #{mlp_forward.1} parent=1 // pred_check
      _
    $region27: #{mlp_forward.1} parent=1 // pred_check_branch
      %212 = sbr.rel (0) target = $region29
    $region28: #{mlp_forward.1} parent=1 // pred_region
      _
    $region29: #{mlp_forward.1} parent=1 // pred_fallthru
      _
    // Predicated region
    $region30: #{mlp_forward.1} parent=1 // pred_check
      _
    $region31: #{mlp_forward.1} parent=1 // pred_check_branch
      %214 = sbr.rel (0) target = $region33
    $region32: #{mlp_forward.1} parent=1 // pred_region
      _
    $region33: #{mlp_forward.1} parent=1 // pred_fallthru
      _
    %215 = vsyncpa [#allocation3], 1

</llo_original>
